<compile_context>
chip_gen: v6e
topology: v6e:2x2x1
jax: 0.10.0
libtpu: 0.0.40
codegen_flags: <defaults>
</compile_context>

<pallas_src>
import functools

import jax
import jax.numpy as jnp
from jax import lax
from jax.experimental import pallas as pl
from jax.experimental.pallas import tpu as pltpu


def self_attention_kernel(x_ref, w_ref, b_ref, o_ref, *, ch):
    # x_ref: (C, HW)   w_ref: (3C, C)   b_ref: (3C, 1)   o_ref: (C, HW)
    x = x_ref[...]

    # Fused 1x1-conv projection for q, k, v (single weight push, 3x M).
    qkv = jnp.dot(w_ref[...], x, preferred_element_type=jnp.float32) + b_ref[...]
    qkv = jnp.maximum(qkv, 0.0)                                    # ReLU (3C, HW)

    # Static slices along the sublane axis; C is kept a multiple of 8 so these
    # start on (8,128) tile boundaries and stay copy-free.
    q = qkv[0 * ch:1 * ch, :]                                      # (C, HW)
    k = qkv[1 * ch:2 * ch, :]                                      # (C, HW)
    v = qkv[2 * ch:3 * ch, :]                                      # (C, HW)

    # att = q @ k^T : contract the shared HW axis without materializing k.T.
    att = lax.dot_general(q, k, (((1,), (1,)), ((), ())),
                          preferred_element_type=jnp.float32)      # (C, C)

    # Numerically-stable softmax over the last dim (matches torch.softmax).
    att = att - jnp.max(att, axis=-1, keepdims=True)
    p = jnp.exp(att)
    denom = jnp.sum(p, axis=-1, keepdims=True)                     # >= 1.0
    r = pl.reciprocal(denom, approx=True)                          # EUP slot
    r = r * (2.0 - denom * r)                                      # Newton refine -> ~f32 exact
    p = p * r

    # out = softmax(att) @ value -> (C, HW)  (lane-dense output store)
    o_ref[...] = jnp.dot(p, v, preferred_element_type=jnp.float32).astype(o_ref.dtype)


def self_attention_block(x, wq, bq, wk, bk, wv, bv):
    """x: (B, C, H, W) float32. Weights: (C, C); biases: (C,)."""
    B, C, H, W = x.shape
    HW = H * W

    # Pure reshape (no transpose, no extra HBM traffic): (B, C, H, W) -> (B, C, HW).
    x3 = x.reshape(B, C, HW)

    # Fuse q/k/v projection weights & biases.
    w_qkv = jnp.concatenate([wq, wk, wv], axis=0)                  # (3C, C)
    b_qkv = jnp.concatenate([bq, bk, bv], axis=0).reshape(3 * C, 1)

    kernel = functools.partial(self_attention_kernel, ch=C)

    out = pl.pallas_call(
        kernel,
        out_shape=jax.ShapeDtypeStruct((B, C, HW), jnp.float32),
        grid=(B,),
        in_specs=[
            # x: one batch element per grid step, leading dim squeezed away.
            pl.BlockSpec((None, C, HW), lambda b: (b, 0, 0)),
            # Fused weights / bias: constant block index -> stay resident in VMEM.
            pl.BlockSpec((3 * C, C), lambda b: (0, 0)),
            pl.BlockSpec((3 * C, 1), lambda b: (0, 0)),
        ],
        out_specs=pl.BlockSpec((None, C, HW), lambda b: (b, 0, 0)),
        compiler_params=pltpu.CompilerParams(
            dimension_semantics=("parallel",)),   # batch is independent -> both TCs on v7x
    )(x3, w_qkv, b_qkv)

    # Pure reshape back: (B, C, HW) -> (B, C, H, W).
    return out.reshape(B, C, H, W)


def _reference(x, wq, bq, wk, bk, wv, bv):
    B, C, H, W = x.shape
    x2 = x.reshape(B, C, H * W)

    def conv_relu(w, b):
        return jnp.maximum(jnp.einsum('oc,bcs->bos', w, x2) + b[None, :, None], 0.0)

    q = conv_relu(wq, bq)                       # (B, C, HW)
    k = conv_relu(wk, bk)                       # (B, C, HW)
    v = conv_relu(wv, bv)                       # (B, C, HW)
    att = jnp.einsum('bcs,bds->bcd', q, k)      # (B, C, C)
    att = jax.nn.softmax(att, axis=-1)
    out = jnp.einsum('bcd,bds->bcs', att, v)    # (B, C, HW)
    return out.reshape(B, C, H, W)


if __name__ == "__main__":
    B, C, H, W = 2, 8, 16, 16
    key = jax.random.PRNGKey(0)
    kx, kq, kbq, kk, kbk, kv, kbv = jax.random.split(key, 7)

    x = jax.random.normal(kx, (B, C, H, W), dtype=jnp.float32)

    # Deterministic parameter init (Conv2d 1x1 -> weight (C, C), bias (C,)),
    # scaled like PyTorch's default uniform(-1/sqrt(fan_in), 1/sqrt(fan_in)).
    bound = 1.0 / jnp.sqrt(jnp.float32(C))
    wq = jax.random.uniform(kq, (C, C), jnp.float32, -bound, bound)
    bq = jax.random.uniform(kbq, (C,), jnp.float32, -bound, bound)
    wk = jax.random.uniform(kk, (C, C), jnp.float32, -bound, bound)
    bk = jax.random.uniform(kbk, (C,), jnp.float32, -bound, bound)
    wv = jax.random.uniform(kv, (C, C), jnp.float32, -bound, bound)
    bv = jax.random.uniform(kbv, (C,), jnp.float32, -bound, bound)

    out = self_attention_block(x, wq, bq, wk, bk, wv, bv)
    out = jax.block_until_ready(out)

    ref = _reference(x, wq, bq, wk, bk, wv, bv)
    assert out.shape == (B, C, H, W)
    assert jnp.allclose(out, ref, atol=1e-4, rtol=1e-4), "mismatch vs reference"

    print("KERNEL_OK")
</pallas_src>

<mosaic_0001>
module attributes {stable_mosaic.version = 11 : i64} {
  func.func @self_attention_kernel(%arg0: i32, %arg1: memref<1x8x256xf32, #tpu.memory_space<vmem>>, %arg2: memref<24x8xf32, #tpu.memory_space<vmem>>, %arg3: memref<24x1xf32, #tpu.memory_space<vmem>>, %arg4: memref<1x8x256xf32, #tpu.memory_space<vmem>>) attributes {dimension_semantics = [#tpu.dimension_semantics<parallel>], iteration_bounds = array<i64: 2>, scalar_prefetch = 0 : i64, scratch_operands = 0 : i64, tpu.core_type = #tpu.core_type<tc>, window_params = [{transform_indices = @transform_0, window_bounds = array<i64: 1, 8, 256>}, {pipeline_mode = #tpu.pipeline_mode<synchronous>, transform_indices = @transform_1, window_bounds = array<i64: 24, 8>}, {pipeline_mode = #tpu.pipeline_mode<synchronous>, transform_indices = @transform_2, window_bounds = array<i64: 24, 1>}, {transform_indices = @transform_3, window_bounds = array<i64: 1, 8, 256>}]} {
    %c0 = arith.constant 0 : index
    %c0_0 = arith.constant 0 : index
    %c0_1 = arith.constant 0 : index
    %0 = vector.load %arg1[%c0, %c0_0, %c0_1] : memref<1x8x256xf32, #tpu.memory_space<vmem>>, vector<1x8x256xf32>
    %1 = vector.shape_cast %0 : vector<1x8x256xf32> to vector<8x256xf32>
    %c0_2 = arith.constant 0 : index
    %c0_3 = arith.constant 0 : index
    %2 = vector.load %arg2[%c0_2, %c0_3] : memref<24x8xf32, #tpu.memory_space<vmem>>, vector<24x8xf32>
    %cst = arith.constant dense<0.000000e+00> : vector<24x256xf32>
    %3 = tpu.matmul %2, %1, %cst {dimension_numbers = #tpu.dot_dimension_numbers<[1], [0], [0], [1], [0, 0, 1, 1], [], []>} : vector<24x8xf32>, vector<8x256xf32>, vector<24x256xf32> -> vector<24x256xf32>
    %c0_4 = arith.constant 0 : index
    %c0_5 = arith.constant 0 : index
    %4 = vector.load %arg3[%c0_4, %c0_5] : memref<24x1xf32, #tpu.memory_space<vmem>>, vector<24x1xf32>
    %5 = vector.broadcast %4 : vector<24x1xf32> to vector<24x256xf32>
    %6 = arith.addf %3, %5 : vector<24x256xf32>
    %cst_6 = arith.constant 0.000000e+00 : f32
    %7 = vector.broadcast %cst_6 : f32 to vector<24x256xf32>
    %8 = arith.maximumf %6, %7 : vector<24x256xf32>
    %9 = vector.extract_strided_slice %8 {offsets = [0, 0], sizes = [8, 256], strides = [1, 1]} : vector<24x256xf32> to vector<8x256xf32>
    %10 = vector.extract_strided_slice %8 {offsets = [8, 0], sizes = [8, 256], strides = [1, 1]} : vector<24x256xf32> to vector<8x256xf32>
    %11 = vector.extract_strided_slice %8 {offsets = [16, 0], sizes = [8, 256], strides = [1, 1]} : vector<24x256xf32> to vector<8x256xf32>
    %cst_7 = arith.constant dense<0.000000e+00> : vector<8x8xf32>
    %12 = tpu.matmul %9, %10, %cst_7 {dimension_numbers = #tpu.dot_dimension_numbers<[1], [1], [0], [0], [0, 0, 1, 0], [], []>} : vector<8x256xf32>, vector<8x256xf32>, vector<8x8xf32> -> vector<8x8xf32>
    %cst_8 = arith.constant dense<0xFF800000> : vector<8xf32>
    %13 = vector.multi_reduction <maximumf>, %12, %cst_8 [1] : vector<8x8xf32> to vector<8xf32>
    %14 = vector.shape_cast %13 : vector<8xf32> to vector<8x1xf32>
    %15 = vector.broadcast %14 : vector<8x1xf32> to vector<8x8xf32>
    %16 = arith.subf %12, %15 : vector<8x8xf32>
    %17 = math.exp %16 : vector<8x8xf32>
    %cst_9 = arith.constant dense<0.000000e+00> : vector<8xf32>
    %18 = vector.multi_reduction <add>, %17, %cst_9 [1] : vector<8x8xf32> to vector<8xf32>
    %19 = vector.shape_cast %18 : vector<8xf32> to vector<8x1xf32>
    %20 = tpu.reciprocal %19 {approx = true} : vector<8x1xf32> -> vector<8x1xf32>
    %21 = arith.mulf %19, %20 : vector<8x1xf32>
    %cst_10 = arith.constant 2.000000e+00 : f32
    %22 = vector.broadcast %cst_10 : f32 to vector<8x1xf32>
    %23 = arith.subf %22, %21 : vector<8x1xf32>
    %24 = arith.mulf %20, %23 : vector<8x1xf32>
    %25 = vector.broadcast %24 : vector<8x1xf32> to vector<8x8xf32>
    %26 = arith.mulf %17, %25 : vector<8x8xf32>
    %cst_11 = arith.constant dense<0.000000e+00> : vector<8x256xf32>
    %27 = tpu.matmul %26, %11, %cst_11 {dimension_numbers = #tpu.dot_dimension_numbers<[1], [0], [0], [1], [0, 0, 1, 1], [], []>} : vector<8x8xf32>, vector<8x256xf32>, vector<8x256xf32> -> vector<8x256xf32>
    %c0_12 = arith.constant 0 : index
    %c0_13 = arith.constant 0 : index
    %c0_14 = arith.constant 0 : index
    %28 = vector.load %arg4[%c0_12, %c0_13, %c0_14] : memref<1x8x256xf32, #tpu.memory_space<vmem>>, vector<1x8x256xf32>
    %29 = vector.shape_cast %28 : vector<1x8x256xf32> to vector<8x256xf32>
    %30 = vector.shape_cast %27 : vector<8x256xf32> to vector<1x8x256xf32>
    tpu.vector_store %arg4[%c0_12, %c0_13, %c0_14], %30 {strides = array<i32>} : memref<1x8x256xf32, #tpu.memory_space<vmem>>, vector<1x8x256xf32>,
    return
  }
  func.func @transform_0(%arg0: i32) -> (i32, i32, i32) {
    %c0_i32 = arith.constant 0 : i32
    %c0_i32_0 = arith.constant 0 : i32
    %c0_i32_1 = arith.constant 0 : i32
    return %arg0, %c0_i32, %c0_i32_0 : i32, i32, i32
  }
  func.func @transform_1(%arg0: i32) -> (i32, i32) {
    %c0_i32 = arith.constant 0 : i32
    %c0_i32_0 = arith.constant 0 : i32
    %c0_i32_1 = arith.constant 0 : i32
    return %c0_i32, %c0_i32_0 : i32, i32
  }
  func.func @transform_2(%arg0: i32) -> (i32, i32) {
    %c0_i32 = arith.constant 0 : i32
    %c0_i32_0 = arith.constant 0 : i32
    %c0_i32_1 = arith.constant 0 : i32
    return %c0_i32, %c0_i32_0 : i32, i32
  }
  func.func @transform_3(%arg0: i32) -> (i32, i32, i32) {
    %c0_i32 = arith.constant 0 : i32
    %c0_i32_0 = arith.constant 0 : i32
    %c0_i32_1 = arith.constant 0 : i32
    return %arg0, %c0_i32, %c0_i32_0 : i32, i32, i32
  }
}

</mosaic_0001>

<llo_original>
// kernel: tpu_custom_call.1
$region0: #{tpu_custom_call.1}
  #allocation0 [shape = 'u32[]', space=smem, size = 0x4, offset = 0x4, fixed_abs, tag = 'smem constant byte address 0x4 - core index']
  #allocation1 [shape = 'u32[144,128]{1,0:T(1,128)}', space=vmem, size = 0x12000, scoped, tag = 'internal scratch']
  %s0 = inlined_call_operand.vmem [shape: f32[2,8,256], index: 0, kind: input, shape index: {}]
  %s1 = inlined_call_operand.vmem [shape: f32[24,8], index: 1, kind: input, shape index: {}]
  %s2 = inlined_call_operand.vmem [shape: f32[24,1], index: 2, kind: input, shape index: {}]
  %s3 = inlined_call_operand.hbm [shape: f32[2,8,256], index: 3, kind: output, shape index: {}]
  %s4 = sld [smem:[#allocation0]]
  $region45: #{tpu_custom_call.1} parent=0
    _
  %s6 = ssub.s32 1, %s4
  %s7 = scalar_select 0, %s6, %s4
  $region1: #{tpu_custom_call.1} parent=0
    #allocation2 [shape = 'u8[16384]{0}', space=vmem, size = 0x4000, scoped, tag = 'output window, operand 0']
    #allocation3 [shape = 's32[2]{0}', space=sflag, size = 0x8, scoped, tag = 'scoped memory for tpu_custom_call.1']
    %8 = vsyncpa [#allocation3], 0
    %s9 = scalar_lea.sflag [#allocation3], 1
    %10 = vsyncpa %s9, 0
    loop: start=0, step=1, limit=4
    $region2: #{tpu_custom_call.1} parent=1 // loop_pre_header
      _
    $region3: #{tpu_custom_call.1} parent=1 // loop_header
      %s12 = sphi 0, %s16
      %p13 = scmp.ge.s32.totalorder %s12, 4
      %s22 = sphi 0, %s24
      %s25 = sphi 0, %s22
      %s26 = sphi 0, %s25
      %s42 = sphi 0, %s26
      %s46 = sphi 0, %s46
      %s48 = sphi 0, %s46
      %s49 = sphi 0, %s48
      %s63 = sphi 0, %s49
      %s67 = sphi 0, %s67
      %s69 = sphi 0, %s67
      %s70 = sphi 0, %s69
      %s84 = sphi 0, %s70
      %s90 = sphi 0, %s92
      %s93 = sphi 0, %s90
      %s94 = sphi 0, %s93
      %s110 = sphi 0, %s94
    $region4: #{tpu_custom_call.1} parent=1 // loop_header_branch
      %15 = sbr.rel (%p13) target = $region8
    $region5: #{tpu_custom_call.1} parent=1 // loop_body
      %s17 = ssub.s32 %s12, 1
      %s18 = ssub.s32 %s12, 2
      %s19 = sadd.s32 %s12, 1
      %s20 = ssub.s32 %s12, %s19
      %p21 = scmp.eq.s32.totalorder %s20, 0
      %s23 = sadd.s32 %s22, 1
      %s24 = scalar_select %p21, %s22, %s23
      %p27 = pneg %p21
      %p28 = scmp.eq.s32.totalorder %s12, 1
      %p29 = por %p27, %p28
      %p30 = scmp.ne.s32.totalorder %s22, %s25
      %p31 = scmp.eq.s32.totalorder %s12, 0
      %p32 = por %p30, %p31
      %p33 = scmp.ne.s32.totalorder %s22, %s25
      %p34 = scmp.eq.s32.totalorder %s17, 1
      %p35 = por %p33, %p34
      %p36 = scmp.ne.s32.totalorder %s25, %s26
      %p37 = scmp.eq.s32.totalorder %s17, 0
      %p38 = por %p36, %p37
      %p39 = scmp.ne.s32.totalorder %s25, %s26
      %p40 = scmp.eq.s32.totalorder %s18, 1
      %p41 = por %p39, %p40
      %p43 = scmp.ne.s32.totalorder %s26, %s42
      %p44 = scmp.eq.s32.totalorder %s18, 0
      %p45 = por %p43, %p44
      %s47 = sadd.s32 %s46, 1
      %p50 = scmp.eq.s32.totalorder %s12, 1
      %p51 = scmp.ne.s32.totalorder %s46, %s48
      %p52 = scmp.eq.s32.totalorder %s12, 0
      %p53 = por %p51, %p52
      %p54 = scmp.ne.s32.totalorder %s46, %s48
      %p55 = scmp.eq.s32.totalorder %s17, 1
      %p56 = por %p54, %p55
      %p57 = scmp.ne.s32.totalorder %s48, %s49
      %p58 = scmp.eq.s32.totalorder %s17, 0
      %p59 = por %p57, %p58
      %p60 = scmp.ne.s32.totalorder %s48, %s49
      %p61 = scmp.eq.s32.totalorder %s18, 1
      %p62 = por %p60, %p61
      %p64 = scmp.ne.s32.totalorder %s49, %s63
      %p65 = scmp.eq.s32.totalorder %s18, 0
      %p66 = por %p64, %p65
      %s68 = sadd.s32 %s67, 1
      %p71 = scmp.eq.s32.totalorder %s12, 1
      %p72 = scmp.ne.s32.totalorder %s67, %s69
      %p73 = scmp.eq.s32.totalorder %s12, 0
      %p74 = por %p72, %p73
      %p75 = scmp.ne.s32.totalorder %s67, %s69
      %p76 = scmp.eq.s32.totalorder %s17, 1
      %p77 = por %p75, %p76
      %p78 = scmp.ne.s32.totalorder %s69, %s70
      %p79 = scmp.eq.s32.totalorder %s17, 0
      %p80 = por %p78, %p79
      %p81 = scmp.ne.s32.totalorder %s69, %s70
      %p82 = scmp.eq.s32.totalorder %s18, 1
      %p83 = por %p81, %p82
      %p85 = scmp.ne.s32.totalorder %s70, %s84
      %p86 = scmp.eq.s32.totalorder %s18, 0
      %p87 = por %p85, %p86
      %s88 = ssub.s32 %s12, %s19
      %p89 = scmp.eq.s32.totalorder %s88, 0
      %s91 = sadd.s32 %s90, 1
      %s92 = scalar_select %p89, %s90, %s91
      %p95 = pneg %p89
      %p96 = scmp.eq.s32.totalorder %s12, 1
      %p97 = por %p95, %p96
      %p98 = scmp.ne.s32.totalorder %s90, %s93
      %p99 = scmp.eq.s32.totalorder %s12, 0
      %p100 = por %p98, %p99
      %p101 = scmp.ne.s32.totalorder %s90, %s93
      %p102 = scmp.eq.s32.totalorder %s17, 1
      %p103 = por %p101, %p102
      %p104 = scmp.ne.s32.totalorder %s93, %s94
      %p105 = scmp.eq.s32.totalorder %s17, 0
      %p106 = por %p104, %p105
      %p107 = scmp.ne.s32.totalorder %s93, %s94
      %p108 = scmp.eq.s32.totalorder %s18, 1
      %p109 = por %p107, %p108
      %p111 = scmp.ne.s32.totalorder %s94, %s110
      %p112 = scmp.eq.s32.totalorder %s18, 0
      %p113 = por %p111, %p112
      %p114 = scmp.le.s32.totalorder 1, %s12
      %p115 = scmp.lt.s32.totalorder %s12, 3
      %p116 = pnand %p114, %p115
      %p117 = pneg %p116
      // Predicated region
      $region9: #{tpu_custom_call.1} parent=5 // pred_check
        _
      $region10: #{tpu_custom_call.1} parent=5 // pred_check_branch
        %119 = sbr.rel (%p116) target = $region12
      $region11: #{tpu_custom_call.1} parent=5 // pred_region
        %s120 = ssub.s32 %s12, 1
        // Predicated region
        $region13: #{tpu_custom_call.1} parent=11 // pred_check
          %p121 = pneg %p59
        $region14: #{tpu_custom_call.1} parent=11 // pred_check_branch
          %123 = sbr.rel (%p121) target = $region16
        $region15: #{tpu_custom_call.1} parent=11 // pred_region
          _
        $region16: #{tpu_custom_call.1} parent=11 // pred_fallthru
          _
        // Predicated region
        $region17: #{tpu_custom_call.1} parent=11 // pred_check
          %p124 = pneg %p80
        $region18: #{tpu_custom_call.1} parent=11 // pred_check_branch
          %126 = sbr.rel (%p124) target = $region20
        $region19: #{tpu_custom_call.1} parent=11 // pred_region
          _
        $region20: #{tpu_custom_call.1} parent=11 // pred_fallthru
          _
      $region12: #{tpu_custom_call.1} parent=5 // pred_fallthru
        _
      %p127 = scmp.lt.s32.totalorder %s12, 2
      // Predicated region
      $region21: #{tpu_custom_call.1} parent=5 // pred_check
        %p128 = pneg %p127
      $region22: #{tpu_custom_call.1} parent=5 // pred_check_branch
        %130 = sbr.rel (%p128) target = $region24
      $region23: #{tpu_custom_call.1} parent=5 // pred_region
        // Predicated region
        $region25: #{tpu_custom_call.1} parent=23 // pred_check
          %p131 = pneg %p32
        $region26: #{tpu_custom_call.1} parent=23 // pred_check_branch
          %133 = sbr.rel (%p131) target = $region28
        $region27: #{tpu_custom_call.1} parent=23 // pred_region
          %p134 = scmp.lt.s32.totalorder %s12, 1
          %s135 = scalar_select %p134, %s12, 1
          %s136 = smul.addr %s135, 2
          %s137 = smul.addr %s136, 8
          %s138 = scalar_lea.vmem %s0, %s137
        $region28: #{tpu_custom_call.1} parent=23 // pred_fallthru
          _
      $region24: #{tpu_custom_call.1} parent=5 // pred_fallthru
        _
      %p139 = scmp.le.s32.totalorder 1, %s12
      %p140 = scmp.lt.s32.totalorder %s12, 3
      %p141 = pnand %p139, %p140
      %p142 = pneg %p141
      // Predicated region
      $region29: #{tpu_custom_call.1} parent=5 // pred_check
        _
      $region30: #{tpu_custom_call.1} parent=5 // pred_check_branch
        %144 = sbr.rel (%p141) target = $region32
      $region31: #{tpu_custom_call.1} parent=5 // pred_region
        %s145 = ssub.s32 %s12, 1
        %p146 = scmp.lt.s32.totalorder %s17, 1
        %s147 = scalar_select %p146, %s17, 1
        %s148 = smul.addr %s147, 2
        %s149 = smul.addr %s148, 8
        %s150 = scalar_lea.vmem %s0, %s149
        %p151 = pneg %p38
        %p152 = pneg %p35
        %p153 = pneg %p59
        %p154 = pneg %p56
        %p155 = pneg %p80
        %p156 = pneg %p77
        %p157 = pneg %p106
        %p158 = pneg %p103
        %s159 = sand.u32 %s93, 1
        %s160 = scalar_lea.sflag [#allocation3], %s159
        %s161 = sand.u32 %s93, 1
        %s162 = smul.addr %s161, 16
        %s163 = scalar_lea.vmem [#allocation2], %s162
        %p164 = scmp.lt.s32.totalorder %s17, 1
        %s165 = scalar_select %p164, %s17, 1
        %s166 = smul.addr %s165, 2
        %s167 = smul.addr %s166, 8
        %s168 = scalar_lea.vmem %s0, %s167
        %v169 = vld [vmem:[%s168] sm:$0xff]
        %v170 = vld [vmem:[%s168 + $0x8] sm:$0xff]
        %v171 = vld [vmem:[%s1] sm:$0xff]
        %v172 = vld [vmem:[%s1 + $0x8] sm:$0xff]
        %v173 = vld [vmem:[%s1 + $0x10] sm:$0xff]
        %v174 = vld [vmem:[%s2] sm:$0xff]
        %v175 = vld [vmem:[%s2 + $0x8] sm:$0xff]
        %v176 = vld [vmem:[%s2 + $0x10] sm:$0xff]
        %178 = vset.pattern.permute.xlu0 0
        %179 = vperm.xlu0 %178, %v174
        %v180 = vpop.permute.xlu0 %179
        %183 = vset.pattern.permute.xlu0 0
        %184 = vperm.xlu0 %183, %v175
        %v185 = vpop.permute.xlu0 %184
        %188 = vset.pattern.permute.xlu0 0
        %189 = vperm.xlu0 %188, %v176
        %v190 = vpop.permute.xlu0 %189
        %vm192 = vcmask 64512
        %v194 = vsel %vm192, %v171, 0
        %v197 = vsel %vm192, %v172, 0
        %v200 = vsel %vm192, %v173, 0
        %202 = vmatprep.subr.mxu0 0.0
        %203 = vmatpush1.msra.mxu0 0.0
        %204 = vmatprep.subr.mxu0 0.0
        %205 = vmatpush1.msra.mxu0 0.0
        %206 = vmatprep.subr.mxu0 0.0
        %207 = vmatpush1.msra.mxu0 0.0
        %208 = vmatprep.subr.mxu0 0.0
        %209 = vmatpush1.msra.mxu0 0.0
        %210 = vmatprep.subr.mxu0 0.0
        %211 = vmatpush1.msra.mxu0 0.0
        %212 = vmatprep.subr.mxu0 0.0
        %213 = vmatpush1.msra.mxu0 0.0
        %214 = vmatprep.subr.mxu0 0.0
        %215 = vmatpush1.msra.mxu0 0.0
        %216 = vmatprep.subr.mxu0 0.0
        %217 = vmatpush1.msra.mxu0 0.0
        %218 = vmatprep.subr.mxu0 0.0
        %219 = vmatpush1.msra.mxu0 0.0
        %220 = vmatprep.subr.mxu0 0.0
        %221 = vmatpush1.msra.mxu0 0.0
        %222 = vmatprep.subr.mxu0 0.0
        %223 = vmatpush1.msra.mxu0 0.0
        %224 = vmatprep.subr.mxu0 0.0
        %225 = vmatpush1.msra.mxu0 0.0
        %226 = vmatprep.subr.mxu0 0.0
        %227 = vmatpush1.msra.mxu0 0.0
        %228 = vmatprep.subr.mxu0 0.0
        %229 = vmatpush1.msra.mxu0 0.0
        %230 = vmatprep.subr.mxu0 0.0
        %231 = vmatpush1.msra.mxu0 0.0
        %232 = vmatprep.subr.mxu0 %v170
        %233 = vmatpush1.msra.mxu0 %v169
        %234 = vmatprep.subr.mxu0 0.0
        %235 = vmatpush2.msra.mxu0 0.0
        %236 = vmatprep.subr.mxu0 0.0
        %237 = vmatpush2.msra.mxu0 0.0
        %238 = vmatprep.subr.mxu0 0.0
        %239 = vmatpush2.msra.mxu0 0.0
        %240 = vmatprep.subr.mxu0 0.0
        %241 = vmatpush2.msra.mxu0 0.0
        %242 = vmatprep.subr.mxu0 0.0
        %243 = vmatpush2.msra.mxu0 0.0
        %244 = vmatprep.subr.mxu0 0.0
        %245 = vmatpush2.msra.mxu0 0.0
        %246 = vmatprep.subr.mxu0 0.0
        %247 = vmatpush2.msra.mxu0 0.0
        %248 = vmatprep.subr.mxu0 0.0
        %249 = vmatpush2.msra.mxu0 0.0
        %250 = vmatprep.subr.mxu0 0.0
        %251 = vmatpush2.msra.mxu0 0.0
        %252 = vmatprep.subr.mxu0 0.0
        %253 = vmatpush2.msra.mxu0 0.0
        %254 = vmatprep.subr.mxu0 0.0
        %255 = vmatpush2.msra.mxu0 0.0
        %256 = vmatprep.subr.mxu0 0.0
        %257 = vmatpush2.msra.mxu0 0.0
        %258 = vmatprep.subr.mxu0 0.0
        %259 = vmatpush2.msra.mxu0 0.0
        %260 = vmatprep.subr.mxu0 0.0
        %261 = vmatpush2.msra.mxu0 0.0
        %262 = vmatprep.subr.mxu0 0.0
        %263 = vmatpush2.msra.mxu0 0.0
        %264 = vmatprep.subr.mxu0 0.0
        %265 = vmatpush2.msra.mxu0 0.0
        %266 = vmatprep.mubr.f32.mxu0 0.0
        %267 = vmatmul.mubr.f32.gmra.mxu0 %v194
        %v268 = vpop.f32.mrf.mxu0
        %v269 = vadd.f32 %v180, %v268
        %v270 = vpop.f32.mrf.mxu0
        %v271 = vadd.f32 %v180, %v270
        %272 = vmatprep.mubr.f32.mxu0 0.0
        %273 = vmatmul.mubr.f32.gmra.mxu0 %v197
        %v274 = vpop.f32.mrf.mxu0
        %v275 = vadd.f32 %v185, %v274
        %v276 = vpop.f32.mrf.mxu0
        %v277 = vadd.f32 %v185, %v276
        %278 = vmatprep.mubr.f32.mxu0 0.0
        %279 = vmatmul.mubr.f32.gmra.mxu0 %v200
        %v280 = vpop.f32.mrf.mxu0
        %v281 = vadd.f32 %v190, %v280
        %v282 = vpop.f32.mrf.mxu0
        %v283 = vadd.f32 %v190, %v282
        %284 = vdwg.mxu0
        %v285 = vmax.f32 %v269, 0.0
        %v286 = vmax.f32 %v271, 0.0
        %v287 = vmax.f32 %v275, 0.0
        %v288 = vmax.f32 %v277, 0.0
        %v289 = vmax.f32 %v281, 0.0
        %v290 = vmax.f32 %v283, 0.0
        %291 = vmatprep.subr.mxu0 0.0
        %292 = vmatpush1.xpose.msra.mxu0 0.0
        %293 = vmatprep.subr.mxu0 0.0
        %294 = vmatpush1.xpose.msra.mxu0 0.0
        %295 = vmatprep.subr.mxu0 0.0
        %296 = vmatpush1.xpose.msra.mxu0 0.0
        %297 = vmatprep.subr.mxu0 0.0
        %298 = vmatpush1.xpose.msra.mxu0 0.0
        %299 = vmatprep.subr.mxu0 0.0
        %300 = vmatpush1.xpose.msra.mxu0 0.0
        %301 = vmatprep.subr.mxu0 0.0
        %302 = vmatpush1.xpose.msra.mxu0 0.0
        %303 = vmatprep.subr.mxu0 0.0
        %304 = vmatpush1.xpose.msra.mxu0 0.0
        %305 = vmatprep.subr.mxu0 0.0
        %306 = vmatpush1.xpose.msra.mxu0 0.0
        %307 = vmatprep.subr.mxu0 0.0
        %308 = vmatpush1.xpose.msra.mxu0 0.0
        %309 = vmatprep.subr.mxu0 0.0
        %310 = vmatpush1.xpose.msra.mxu0 0.0
        %311 = vmatprep.subr.mxu0 0.0
        %312 = vmatpush1.xpose.msra.mxu0 0.0
        %313 = vmatprep.subr.mxu0 0.0
        %314 = vmatpush1.xpose.msra.mxu0 0.0
        %315 = vmatprep.subr.mxu0 0.0
        %316 = vmatpush1.xpose.msra.mxu0 0.0
        %317 = vmatprep.subr.mxu0 0.0
        %318 = vmatpush1.xpose.msra.mxu0 0.0
        %319 = vmatprep.subr.mxu0 0.0
        %320 = vmatpush1.xpose.msra.mxu0 0.0
        %321 = vmatprep.subr.mxu0 %v288
        %322 = vmatpush1.xpose.msra.mxu0 %v287
        %323 = vmatprep.subr.mxu0 0.0
        %324 = vmatpush2.xpose.msra.mxu0 0.0
        %325 = vmatprep.subr.mxu0 0.0
        %326 = vmatpush2.xpose.msra.mxu0 0.0
        %327 = vmatprep.subr.mxu0 0.0
        %328 = vmatpush2.xpose.msra.mxu0 0.0
        %329 = vmatprep.subr.mxu0 0.0
        %330 = vmatpush2.xpose.msra.mxu0 0.0
        %331 = vmatprep.subr.mxu0 0.0
        %332 = vmatpush2.xpose.msra.mxu0 0.0
        %333 = vmatprep.subr.mxu0 0.0
        %334 = vmatpush2.xpose.msra.mxu0 0.0
        %335 = vmatprep.subr.mxu0 0.0
        %336 = vmatpush2.xpose.msra.mxu0 0.0
        %337 = vmatprep.subr.mxu0 0.0
        %338 = vmatpush2.xpose.msra.mxu0 0.0
        %339 = vmatprep.subr.mxu0 0.0
        %340 = vmatpush2.xpose.msra.mxu0 0.0
        %341 = vmatprep.subr.mxu0 0.0
        %342 = vmatpush2.xpose.msra.mxu0 0.0
        %343 = vmatprep.subr.mxu0 0.0
        %344 = vmatpush2.xpose.msra.mxu0 0.0
        %345 = vmatprep.subr.mxu0 0.0
        %346 = vmatpush2.xpose.msra.mxu0 0.0
        %347 = vmatprep.subr.mxu0 0.0
        %348 = vmatpush2.xpose.msra.mxu0 0.0
        %349 = vmatprep.subr.mxu0 0.0
        %350 = vmatpush2.xpose.msra.mxu0 0.0
        %351 = vmatprep.subr.mxu0 0.0
        %352 = vmatpush2.xpose.msra.mxu0 0.0
        %353 = vmatprep.subr.mxu0 0.0
        %354 = vmatpush2.xpose.msra.mxu0 0.0
        %355 = vmatprep.mubr.f32.mxu0 %v286
        %356 = vmatmul.mubr.f32.gmra.mxu0 %v285
        %v357 = vpop.f32.mrf.mxu0
        %v358 = vadd.f32 0.0, %v357
        %v359 = vpop.f32.mrf.mxu0
        %360 = vdwg.mxu0
        %v361 = vsel %vm192, %v358, -inf
        %362 = vmax.xlane.f32.xlu0 %v361
        %v363 = vpop.xlane.xlu0 %362
        %v364 = vsub.f32 %v358, %v363
        %v365 = vmul.f32 %v364, 1.442695
        %v366 = vpow.pop %v365
        %v367 = vsel %vm192, %v366, 0.0
        %368 = vadd.xlane.f32.xlu0 %v367
        %v369 = vpop.xlane.xlu0 %368
        %v370 = vrcp.pop %v369
        %v371 = vmul.f32 %v369, %v370
        %v372 = vsub.f32 2.0, %v371
        %v373 = vmul.f32 %v370, %v372
        %v374 = vmul.f32 %v366, %v373
        %v376 = vsel %vm192, %v374, 0
        %378 = vmatprep.subr.mxu0 0.0
        %379 = vmatpush1.msra.mxu0 0.0
        %380 = vmatprep.subr.mxu0 0.0
        %381 = vmatpush1.msra.mxu0 0.0
        %382 = vmatprep.subr.mxu0 0.0
        %383 = vmatpush1.msra.mxu0 0.0
        %384 = vmatprep.subr.mxu0 0.0
        %385 = vmatpush1.msra.mxu0 0.0
        %386 = vmatprep.subr.mxu0 0.0
        %387 = vmatpush1.msra.mxu0 0.0
        %388 = vmatprep.subr.mxu0 0.0
        %389 = vmatpush1.msra.mxu0 0.0
        %390 = vmatprep.subr.mxu0 0.0
        %391 = vmatpush1.msra.mxu0 0.0
        %392 = vmatprep.subr.mxu0 0.0
        %393 = vmatpush1.msra.mxu0 0.0
        %394 = vmatprep.subr.mxu0 0.0
        %395 = vmatpush1.msra.mxu0 0.0
        %396 = vmatprep.subr.mxu0 0.0
        %397 = vmatpush1.msra.mxu0 0.0
        %398 = vmatprep.subr.mxu0 0.0
        %399 = vmatpush1.msra.mxu0 0.0
        %400 = vmatprep.subr.mxu0 0.0
        %401 = vmatpush1.msra.mxu0 0.0
        %402 = vmatprep.subr.mxu0 0.0
        %403 = vmatpush1.msra.mxu0 0.0
        %404 = vmatprep.subr.mxu0 0.0
        %405 = vmatpush1.msra.mxu0 0.0
        %406 = vmatprep.subr.mxu0 0.0
        %407 = vmatpush1.msra.mxu0 0.0
        %408 = vmatprep.subr.mxu0 %v290
        %409 = vmatpush1.msra.mxu0 %v289
        %410 = vmatprep.subr.mxu0 0.0
        %411 = vmatpush2.msra.mxu0 0.0
        %412 = vmatprep.subr.mxu0 0.0
        %413 = vmatpush2.msra.mxu0 0.0
        %414 = vmatprep.subr.mxu0 0.0
        %415 = vmatpush2.msra.mxu0 0.0
        %416 = vmatprep.subr.mxu0 0.0
        %417 = vmatpush2.msra.mxu0 0.0
        %418 = vmatprep.subr.mxu0 0.0
        %419 = vmatpush2.msra.mxu0 0.0
        %420 = vmatprep.subr.mxu0 0.0
        %421 = vmatpush2.msra.mxu0 0.0
        %422 = vmatprep.subr.mxu0 0.0
        %423 = vmatpush2.msra.mxu0 0.0
        %424 = vmatprep.subr.mxu0 0.0
        %425 = vmatpush2.msra.mxu0 0.0
        %426 = vmatprep.subr.mxu0 0.0
        %427 = vmatpush2.msra.mxu0 0.0
        %428 = vmatprep.subr.mxu0 0.0
        %429 = vmatpush2.msra.mxu0 0.0
        %430 = vmatprep.subr.mxu0 0.0
        %431 = vmatpush2.msra.mxu0 0.0
        %432 = vmatprep.subr.mxu0 0.0
        %433 = vmatpush2.msra.mxu0 0.0
        %434 = vmatprep.subr.mxu0 0.0
        %435 = vmatpush2.msra.mxu0 0.0
        %436 = vmatprep.subr.mxu0 0.0
        %437 = vmatpush2.msra.mxu0 0.0
        %438 = vmatprep.subr.mxu0 0.0
        %439 = vmatpush2.msra.mxu0 0.0
        %440 = vmatprep.subr.mxu0 0.0
        %441 = vmatpush2.msra.mxu0 0.0
        %442 = vmatprep.mubr.f32.mxu0 0.0
        %443 = vmatmul.mubr.f32.gmra.mxu0 %v376
        %v444 = vpop.f32.mrf.mxu0
        %v445 = vadd.f32 0.0, %v444
        %v446 = vpop.f32.mrf.mxu0
        %v447 = vadd.f32 0.0, %v446
        %448 = vdwg.mxu0
        %449 = vst [vmem:[%s163] sm:$0xff] %v445
        %450 = vst [vmem:[%s163 + $0x8] sm:$0xff] %v447
        %s451 = sand.u32 %s93, 1
        %s452 = scalar_lea.sflag [#allocation3], %s451
        %s453 = sand.u32 %s93, 1
        %s454 = smul.addr %s453, 16
        %s455 = scalar_lea.vmem [#allocation2], %s454
        // Predicated region
        $region33: #{tpu_custom_call.1} parent=31 // pred_check
          %p456 = pneg %p103
        $region34: #{tpu_custom_call.1} parent=31 // pred_check_branch
          %458 = sbr.rel (%p456) target = $region36
        $region35: #{tpu_custom_call.1} parent=31 // pred_region
          %s460 = ssub.s32 256, 256
          %461 = vsyncadd %s452, %s460
          %s462 = smul.addr %s17, 2
          %s463 = smul.addr %s462, 128
          %s464 = scalar_lea.hbm %s3, %s463
          %s466 = sshll.u32 %s455, 4
          %s467 = int_to_ptr.vmem [resolvable:$true] %s466
          %469 = dma.vmem_to_hbm [thread:$0]  %s467, 256, %s464, %s452
        $region36: #{tpu_custom_call.1} parent=31 // pred_fallthru
          _
      $region32: #{tpu_custom_call.1} parent=5 // pred_fallthru
        _
      %p470 = scmp.le.s32.totalorder 2, %s12
      // Predicated region
      $region37: #{tpu_custom_call.1} parent=5 // pred_check
        %p471 = pneg %p470
      $region38: #{tpu_custom_call.1} parent=5 // pred_check_branch
        %473 = sbr.rel (%p471) target = $region40
      $region39: #{tpu_custom_call.1} parent=5 // pred_region
        %s474 = ssub.s32 %s12, 2
        // Predicated region
        $region41: #{tpu_custom_call.1} parent=39 // pred_check
          %p475 = pneg %p109
        $region42: #{tpu_custom_call.1} parent=39 // pred_check_branch
          %477 = sbr.rel (%p475) target = $region44
        $region43: #{tpu_custom_call.1} parent=39 // pred_region
          %s478 = sand.u32 %s94, 1
          %s479 = scalar_lea.sflag [#allocation3], %s478
          %s480 = sand.u32 %s94, 1
          %s481 = smul.addr %s480, 16
          %s482 = scalar_lea.vmem [#allocation2], %s481
          %483 = dma.done %s479, 256
        $region44: #{tpu_custom_call.1} parent=39 // pred_fallthru
          _
      $region40: #{tpu_custom_call.1} parent=5 // pred_fallthru
        _
    $region6: #{tpu_custom_call.1} parent=1 // loop_footer
      %s16 = sadd.s32 1, %s12
    $region7: #{tpu_custom_call.1} parent=1 // loop_footer_branch
      %11 = sbr.rel target = $region3
    $region8: #{tpu_custom_call.1} parent=1 // loop_exit
      _
    %484 = vsyncpa [#allocation3], 1
    %s485 = scalar_lea.sflag [#allocation3], 1
    %486 = vsyncpa %s485, 1

</llo_original>
